<compile_context>
chip_gen: v7x
topology: tpu7x:2x2x1
jax: 0.10.0
libtpu: 0.0.40
codegen_flags: <defaults>
</compile_context>

<pallas_src>
import functools

import jax
import jax.numpy as jnp
from jax.experimental import pallas as pl
from jax.experimental.pallas import tpu as pltpu

THRESH = 0.5
DECAY = 0.2

_LANES = 512      # lane-dense slab width (multiple of 128 -> unmasked vst / DMA bursts)
_MAX_ROWS = 512   # rows per block: (512, 512) f32 = 1 MiB per buffer


def _make_kernel(has_mem, block_rows, total_rows):
    """Build the spiking-neuron kernel, specialized on whether a membrane input exists."""
    ragged = (total_rows % block_rows) != 0

    def kernel(*refs):
        if has_mem:
            x_ref, mem_ref, spike_ref, mem_out_ref, psum_ref = refs
            mem = mem_ref[...].astype(jnp.float32) + x_ref[...].astype(jnp.float32)
        else:
            # first timestep: membrane is implicitly zero -> mem = input
            x_ref, spike_ref, mem_out_ref, psum_ref = refs
            mem = x_ref[...].astype(jnp.float32)

        spike = (mem > THRESH).astype(jnp.float32)
        spike_ref[...] = spike.astype(spike_ref.dtype)
        mem_out_ref[...] = (mem * DECAY * (1.0 - spike)).astype(mem_out_ref.dtype)

        # Per-block partial sum of spikes. For a ragged final block, rows past the
        # array end contain garbage reads -> mask them out of the reduction.
        if ragged:
            row = (jax.lax.broadcasted_iota(jnp.int32, spike.shape, 0)
                   + pl.program_id(0) * block_rows)
            spike = jnp.where(row < total_rows, spike, 0.0)
        psum_ref[...] = jnp.broadcast_to(jnp.sum(spike), psum_ref.shape)

    return kernel


def _spike_core(x, mem):
    """Core implementation. mem=None => first timestep (zero membrane, not materialized)."""
    orig_shape = x.shape
    total = x.size
    lanes = _LANES
    pad = (-total) % lanes          # only the tail remainder is ever padded
    rows = (total + pad) // lanes
    block_rows = rows if rows <= _MAX_ROWS else _MAX_ROWS
    grid = pl.cdiv(rows, block_rows)
    has_mem = mem is not None

    def to2d(a):
        if pad:
            a = jnp.pad(a.reshape(-1), (0, pad))   # zeros never cross the 0.5 threshold
        return a.reshape(rows, lanes)

    operands = [to2d(x)]
    if has_mem:
        operands.append(to2d(mem.astype(x.dtype)))

    big_spec = pl.BlockSpec((block_rows, lanes), lambda i: (i, 0))
    psum_spec = pl.BlockSpec((1, 8, 128), lambda i: (i, 0, 0))

    spike2d, mem2d, psum = pl.pallas_call(
        _make_kernel(has_mem, block_rows, rows),
        out_shape=(
            jax.ShapeDtypeStruct((rows, lanes), x.dtype),      # spike (narrow store)
            jax.ShapeDtypeStruct((rows, lanes), x.dtype),      # new membrane
            jax.ShapeDtypeStruct((grid, 8, 128), jnp.float32),  # per-block spike counts
        ),
        grid=(grid,),
        in_specs=[big_spec] * len(operands),
        out_specs=(big_spec, big_spec, psum_spec),
        input_output_aliases={1: 1} if has_mem else {},
        compiler_params=pltpu.CompilerParams(
            dimension_semantics=("parallel",)),
    )(*operands)

    def from2d(a):
        if pad:
            a = a.reshape(-1)[:total]
        return a.reshape(orig_shape)

    spike = from2d(spike2d)
    if spike.dtype != jnp.float32:
        spike = spike.astype(jnp.float32)     # PyTorch `.float()` semantics
    new_mem = from2d(mem2d)
    sparsity = jnp.sum(psum[:, 0, 0]) / total
    return spike, new_mem, sparsity


_spike_jit = jax.jit(_spike_core)


def spike_forward(x, mem=None, is_first=1):
    """Pallas equivalent of Spike.forward.

    Returns (spike, new_mem, sparsity). `is_first` must be a static Python value
    (the first-timestep path is specialized so no zero membrane is ever DMA'd).
    """
    if mem is None or is_first == 1:
        return _spike_jit(x, None)
    return _spike_jit(x, mem)


class Spike:
    """Stateful wrapper mirroring the PyTorch module's interface."""

    def __init__(self, b=3):
        self.b = b              # only used by the (untranslated) surrogate backward
        self.mem = None
        self.sparsity = 0.0

    def __call__(self, x, is_first):
        mem_in = None if (is_first == 1 or self.mem is None) else self.mem
        spike, self.mem, self.sparsity = _spike_jit(x, mem_in)
        return spike


def _reference(x, mem):
    mem = mem + x
    spike = (mem > THRESH).astype(jnp.float32)
    new_mem = mem * DECAY * (1.0 - spike)
    sparsity = spike.sum() / spike.size
    return spike, new_mem, sparsity


def _check(name, got, ref, atol=1e-6):
    assert jnp.allclose(got, ref, atol=atol), f"{name} mismatch"


if __name__ == "__main__":
    key = jax.random.PRNGKey(0)

    # --- small NCHW case (single block): batch=2, channels=4, spatial=16x16 ---
    x1 = jax.random.normal(key, (2, 4, 16, 16), dtype=jnp.float32)
    x2 = jax.random.normal(jax.random.fold_in(key, 1), (2, 4, 16, 16), dtype=jnp.float32)

    spike1, mem1, sp1 = spike_forward(x1, mem=None, is_first=1)   # t=1: membrane reset
    spike2, mem2, sp2 = spike_forward(x2, mem=mem1, is_first=0)   # t=2: membrane carries
    jax.block_until_ready((spike1, mem1, sp1, spike2, mem2, sp2))

    rs1, rm1, rsp1 = _reference(x1, jnp.zeros_like(x1))
    rs2, rm2, rsp2 = _reference(x2, rm1)
    _check("spike t=1", spike1, rs1)
    _check("mem t=1", mem1, rm1)
    _check("sparsity t=1", sp1, rsp1)
    _check("spike t=2", spike2, rs2)
    _check("mem t=2", mem2, rm2)
    _check("sparsity t=2", sp2, rsp2)

    # --- multi-block + ragged last block (exercises grid, masking, partial sums) ---
    x3 = jax.random.normal(jax.random.fold_in(key, 2), (4, 32, 56, 56), dtype=jnp.float32)
    s3, m3, p3 = spike_forward(x3, mem=None, is_first=1)
    s3b, m3b, p3b = spike_forward(x3, mem=m3, is_first=0)
    jax.block_until_ready((s3, m3, p3, s3b, m3b, p3b))
    r3, rm3, rp3 = _reference(x3, jnp.zeros_like(x3))
    r3b, rm3b, rp3b = _reference(x3, rm3)
    _check("spike big t=1", s3, r3)
    _check("mem big t=1", m3, rm3)
    _check("sparsity big t=1", p3, rp3)
    _check("spike big t=2", s3b, r3b)
    _check("mem big t=2", m3b, rm3b)
    _check("sparsity big t=2", p3b, rp3b)

    # --- odd total (exercises the tail-pad path) ---
    x4 = jax.random.normal(jax.random.fold_in(key, 3), (3, 5, 7, 11), dtype=jnp.float32)
    s4, m4, p4 = spike_forward(x4, mem=None, is_first=1)
    jax.block_until_ready((s4, m4, p4))
    r4, rm4, rp4 = _reference(x4, jnp.zeros_like(x4))
    _check("spike odd", s4, r4)
    _check("mem odd", m4, rm4)
    _check("sparsity odd", p4, rp4)

    print("KERNEL_OK")
</pallas_src>

<mosaic_0001>
module attributes {stable_mosaic.version = 11 : i64} {
  func.func @kernel(%arg0: i32, %arg1: memref<4x512xf32, #tpu.memory_space<vmem>>, %arg2: memref<4x512xf32, #tpu.memory_space<vmem>>, %arg3: memref<4x512xf32, #tpu.memory_space<vmem>>, %arg4: memref<1x8x128xf32, #tpu.memory_space<vmem>>) attributes {dimension_semantics = [#tpu.dimension_semantics<parallel>], iteration_bounds = array<i64: 1>, scalar_prefetch = 0 : i64, scratch_operands = 0 : i64, tpu.core_type = #tpu.core_type<tc>, window_params = [{transform_indices = @transform_0, window_bounds = array<i64: 4, 512>}, {transform_indices = @transform_1, window_bounds = array<i64: 4, 512>}, {transform_indices = @transform_2, window_bounds = array<i64: 4, 512>}, {transform_indices = @transform_3, window_bounds = array<i64: 1, 8, 128>}]} {
    %c0 = arith.constant 0 : index
    %c0_0 = arith.constant 0 : index
    %0 = vector.load %arg1[%c0, %c0_0] : memref<4x512xf32, #tpu.memory_space<vmem>>, vector<4x512xf32>
    %cst = arith.constant 5.000000e-01 : f32
    %1 = vector.broadcast %cst : f32 to vector<4x512xf32>
    %2 = arith.cmpf ogt, %0, %1 : vector<4x512xf32>
    %3 = arith.extui %2 : vector<4x512xi1> to vector<4x512xi32>
    %4 = arith.sitofp %3 : vector<4x512xi32> to vector<4x512xf32>
    %c0_1 = arith.constant 0 : index
    %c0_2 = arith.constant 0 : index
    %5 = vector.load %arg2[%c0_1, %c0_2] : memref<4x512xf32, #tpu.memory_space<vmem>>, vector<4x512xf32>
    tpu.vector_store %arg2[%c0_1, %c0_2], %4 {strides = array<i32>} : memref<4x512xf32, #tpu.memory_space<vmem>>, vector<4x512xf32>,
    %cst_3 = arith.constant 2.000000e-01 : f32
    %6 = vector.broadcast %cst_3 : f32 to vector<4x512xf32>
    %7 = arith.mulf %0, %6 : vector<4x512xf32>
    %cst_4 = arith.constant 1.000000e+00 : f32
    %8 = vector.broadcast %cst_4 : f32 to vector<4x512xf32>
    %9 = arith.subf %8, %4 : vector<4x512xf32>
    %10 = arith.mulf %7, %9 : vector<4x512xf32>
    %c0_5 = arith.constant 0 : index
    %c0_6 = arith.constant 0 : index
    %11 = vector.load %arg3[%c0_5, %c0_6] : memref<4x512xf32, #tpu.memory_space<vmem>>, vector<4x512xf32>
    tpu.vector_store %arg3[%c0_5, %c0_6], %10 {strides = array<i32>} : memref<4x512xf32, #tpu.memory_space<vmem>>, vector<4x512xf32>,
    %12 = vector.shape_cast %4 : vector<4x512xf32> to vector<1x4x512xf32>
    %cst_7 = arith.constant dense<0.000000e+00> : vector<1xf32>
    %13 = vector.multi_reduction <add>, %12, %cst_7 [1, 2] : vector<1x4x512xf32> to vector<1xf32>
    %14 = vector.shape_cast %13 : vector<1xf32> to vector<1x1x1xf32>
    %15 = vector.extract %14[0, 0, 0] : f32 from vector<1x1x1xf32>
    %16 = vector.broadcast %15 : f32 to vector<1x8x128xf32>
    %c0_8 = arith.constant 0 : index
    %c0_9 = arith.constant 0 : index
    %c0_10 = arith.constant 0 : index
    %17 = vector.load %arg4[%c0_8, %c0_9, %c0_10] : memref<1x8x128xf32, #tpu.memory_space<vmem>>, vector<1x8x128xf32>
    tpu.vector_store %arg4[%c0_8, %c0_9, %c0_10], %16 {strides = array<i32>} : memref<1x8x128xf32, #tpu.memory_space<vmem>>, vector<1x8x128xf32>,
    return
  }
  func.func @transform_0(%arg0: i32) -> (i32, i32) {
    %c0_i32 = arith.constant 0 : i32
    %c0_i32_0 = arith.constant 0 : i32
    return %arg0, %c0_i32 : i32, i32
  }
  func.func @transform_1(%arg0: i32) -> (i32, i32) {
    %c0_i32 = arith.constant 0 : i32
    %c0_i32_0 = arith.constant 0 : i32
    return %arg0, %c0_i32 : i32, i32
  }
  func.func @transform_2(%arg0: i32) -> (i32, i32) {
    %c0_i32 = arith.constant 0 : i32
    %c0_i32_0 = arith.constant 0 : i32
    return %arg0, %c0_i32 : i32, i32
  }
  func.func @transform_3(%arg0: i32) -> (i32, i32, i32) {
    %c0_i32 = arith.constant 0 : i32
    %c0_i32_0 = arith.constant 0 : i32
    %c0_i32_1 = arith.constant 0 : i32
    return %arg0, %c0_i32, %c0_i32_0 : i32, i32, i32
  }
}

</mosaic_0001>

<llo_original>
// kernel: _spike_core.1
$region0: #{_spike_core.1}
  #allocation0 [shape = 'u32[]', space=smem, size = 0x4, offset = 0x4, fixed_abs, tag = 'smem constant byte address 0x4 - core index']
  #allocation1 [shape = 'u32[144,128]{1,0:T(1,128)}', space=vmem, size = 0x12000, scoped, tag = 'internal scratch']
  %s0 = inlined_call_operand.vmem [shape: f32[4,512], index: 0, kind: input, shape index: {}]
  %s1 = inlined_call_operand.vmem [shape: f32[4,512], index: 1, kind: output, shape index: {0}]
  %s2 = inlined_call_operand.vmem [shape: f32[4,512], index: 2, kind: output, shape index: {1}]
  %s3 = inlined_call_operand.vmem [shape: f32[1,8,128], index: 3, kind: output, shape index: {2}]
  %4 = xla_tuple %s1, %s2, %s3
  %s5 = sld [smem:[#allocation0]]
  $region30: #{_spike_core.1} parent=0
    _
  %s7 = ssub.s32 1, %s5
  %s8 = scalar_select 0, %s7, %s5
  // Predicated region
  $region2: #{_spike_core.1} parent=0 // pred_check
    _
  $region3: #{_spike_core.1} parent=0 // pred_check_branch
    %10 = sbr.rel (0) target = $region5
  $region4: #{_spike_core.1} parent=0 // pred_region
    _
  $region5: #{_spike_core.1} parent=0 // pred_fallthru
    _
  %v11 = vld [vmem:[%s0] sm:$0xff]
  %v12 = vld [vmem:[%s0 + $0x8] sm:$0xff]
  %vm13 = vcmp.gt.f32.partialorder %v11, 0.5
  %vm14 = vcmp.gt.f32.partialorder %v12, 0.5
  %v15 = vsel %vm13, 1, 0
  %v16 = vsel %vm14, 1, 0
  %v17 = vcvt.s32.f32 %v15
  %v18 = vcvt.s32.f32 %v16
  %19 = vst [vmem:[%s1] sm:$0xff] %v17
  %20 = vst [vmem:[%s1 + $0x8] sm:$0xff] %v18
  %v21 = vmul.f32 %v11, 0.2
  %v22 = vmul.f32 %v12, 0.2
  %v23 = vsub.f32 1.0, %v17
  %v24 = vsub.f32 1.0, %v18
  %v25 = vmul.f32 %v21, %v23
  %v26 = vmul.f32 %v22, %v24
  %27 = vst [vmem:[%s2] sm:$0xff] %v25
  %28 = vst [vmem:[%s2 + $0x8] sm:$0xff] %v26
  %v31 = vcombine.high %v17, %v17
  %v32 = vcombine.high %v18, %v18
  %vm35 = vcmask 1043456
  %v36 = vsel %vm35, %v17, 0.0
  %v37 = vsel %vm35, %v31, 0.0
  %v38 = vadd.f32 %v36, %v37
  %v39 = vsel %vm35, %v18, 0.0
  %v40 = vadd.f32 %v38, %v39
  %v41 = vsel %vm35, %v32, 0.0
  %v42 = vadd.f32 %v40, %v41
  %43 = vadd.xlane.f32.xlu0 %v42
  %v44 = vpop.xlane.xlu0 %43
  %v45 = vrot.slane %v44, 4
  %v46 = vadd.f32 %v44, %v45
  %v47 = vrot.slane %v46, 2
  %v48 = vadd.f32 %v46, %v47
  %v49 = vrot.slane %v48, 1
  %v50 = vadd.f32 %v48, %v49
  %s51 = vtos %v50
  %v52 = vstv %s51
  %53 = vst [vmem:[%s3] sm:$0xff] %v52
  // Predicated region
  $region6: #{_spike_core.1} parent=0 // pred_check
    _
  $region7: #{_spike_core.1} parent=0 // pred_check_branch
    %55 = sbr.rel (0) target = $region9
  $region8: #{_spike_core.1} parent=0 // pred_region
    _
  $region9: #{_spike_core.1} parent=0 // pred_fallthru
    _
  // Predicated region
  $region10: #{_spike_core.1} parent=0 // pred_check
    _
  $region11: #{_spike_core.1} parent=0 // pred_check_branch
    %57 = sbr.rel (0) target = $region13
  $region12: #{_spike_core.1} parent=0 // pred_region
    _
  $region13: #{_spike_core.1} parent=0 // pred_fallthru
    _
  // Predicated region
  $region14: #{_spike_core.1} parent=0 // pred_check
    _
  $region15: #{_spike_core.1} parent=0 // pred_check_branch
    %59 = sbr.rel (0) target = $region17
  $region16: #{_spike_core.1} parent=0 // pred_region
    _
  $region17: #{_spike_core.1} parent=0 // pred_fallthru
    _
  // Predicated region
  $region18: #{_spike_core.1} parent=0 // pred_check
    _
  $region19: #{_spike_core.1} parent=0 // pred_check_branch
    %61 = sbr.rel (0) target = $region21
  $region20: #{_spike_core.1} parent=0 // pred_region
    _
  $region21: #{_spike_core.1} parent=0 // pred_fallthru
    _
  // Predicated region
  $region22: #{_spike_core.1} parent=0 // pred_check
    _
  $region23: #{_spike_core.1} parent=0 // pred_check_branch
    %63 = sbr.rel (0) target = $region25
  $region24: #{_spike_core.1} parent=0 // pred_region
    _
  $region25: #{_spike_core.1} parent=0 // pred_fallthru
    _
  // Predicated region
  $region26: #{_spike_core.1} parent=0 // pred_check
    _
  $region27: #{_spike_core.1} parent=0 // pred_check_branch
    %65 = sbr.rel (0) target = $region29
  $region28: #{_spike_core.1} parent=0 // pred_region
    _
  $region29: #{_spike_core.1} parent=0 // pred_fallthru
    _

</llo_original>
